<compile_context>
chip_gen: v7x
topology: tpu7x:2x2x1
jax: 0.10.0
libtpu: 0.0.40
codegen_flags: <defaults>
</compile_context>

<pallas_src>
import functools

import jax
import jax.numpy as jnp
from jax import lax
from jax.experimental import pallas as pl
from jax.experimental.pallas import tpu as pltpu


def _mask_embed_kernel(xk_ref, w2_ref, b_ref, o_ref, *, chunk):
    """One packed output row-tile via a thin-K MXU dot.

    xk_ref : (Kdim, T)     K-major x slab: row p < pack holds the mask value of
                           lane segment p for each packed output row; rows
                           pack..Kdim-1 are zero.
    w2_ref : (Kdim, lanes) folded weights: row p = weight in lanes
                           [p*E, (p+1)*E), zero elsewhere; rows >= pack zero.
    b_ref  : (1, lanes)    bias tiled across the lane segments.
    o_ref  : (T, lanes)    packed output tile.
    """
    w2 = w2_ref[...]
    b = b_ref[...]
    t_rows = o_ref.shape[0]

    def do_rows(r0, nr):
        xc = xk_ref[:, r0:r0 + nr]                      # (Kdim, nr), lane-dense
        # y[r, l] = sum_k xc[k, r] * w2[k, l]:  the MXU performs the
        # lane->sublane spread of x and the weight multiply in one op.
        y = lax.dot_general(
            xc, w2,
            dimension_numbers=(((0,), (0,)), ((), ())),
            preferred_element_type=jnp.float32,
            precision=lax.Precision.HIGHEST)            # (nr, lanes), f32-exact
        o_ref[r0:r0 + nr, :] = (y + b).astype(o_ref.dtype)

    # Static Python loop with static slice bounds: each chunk's result is ~32
    # vregs, so nothing spills, while the grid step still moves a big tile.
    n_full, rem = divmod(t_rows, chunk)
    for c in range(n_full):
        do_rows(c * chunk, chunk)
    if rem:
        do_rows(n_full * chunk, rem)


def mask_embed(x, weight, bias, *, tile_rows=8192, chunk_rows=256,
               use_core_parallel=False):
    """Pallas implementation of MaskEmbed.forward (norm_layer=None -> Identity).

    x:      (B, 1, L) float32   (PyTorch NCL)
    weight: (E,)      float32   (Conv1d weight (E, 1, 1) squeezed)
    bias:   (E,)      float32
    returns (B, L, E) float32
    """
    B, C, L = x.shape
    assert C == 1, "MaskEmbed expects a single input channel"
    E = weight.shape[0]
    assert E > 0 and (128 % E == 0 or E % 128 == 0), (
        "mask_embed packing requires E to divide 128 or be a multiple of 128")
    pack = 128 // E if 128 % E == 0 else 1
    lanes = pack * E
    Kdim = max(8, ((pack + 7) // 8) * 8)     # f32 sublane tile for the dot's K

    N = B * L
    rows = pl.cdiv(N, pack)

    # ---- host-side prep: O(N) work, ~Kdim/lanes of the output traffic -------
    x_flat = x.reshape(-1).astype(jnp.float32)
    tail = rows * pack - N
    if tail:                                  # at most pack-1 padded positions
        x_flat = jnp.pad(x_flat, (0, tail))
    xk = jnp.concatenate(
        [x_flat.reshape(rows, pack).T,
         jnp.zeros((Kdim - pack, rows), jnp.float32)], axis=0)      # (Kdim, rows)

    eye = jnp.eye(pack, dtype=jnp.float32)
    w_planes = (eye[:, :, None] * weight.astype(jnp.float32)[None, None, :]
                ).reshape(pack, lanes)                              # [w||0],[0||w]
    w2 = jnp.concatenate(
        [w_planes, jnp.zeros((Kdim - pack, lanes), jnp.float32)], axis=0)
    b_row = jnp.tile(bias.astype(jnp.float32), pack).reshape(1, lanes)

    # ---- tiling --------------------------------------------------------------
    tile_rows = max(256, (tile_rows // 256) * 256)   # multiple of 128 (lanes of
    t = tile_rows if rows >= tile_rows else rows     # xk) and of chunk_rows
    chunk = max(1, min(chunk_rows, t))
    num_tiles = pl.cdiv(rows, t)                     # last block clipped by Pallas

    # VMEM budget (double-buffered in + out + params), with headroom; stays
    # under 16/32/32 MiB scoped defaults at the default tile size.
    vmem_need = (2 * t * lanes * 4) + (2 * Kdim * t * 4) + (4 * (Kdim + 1) * lanes * 4)
    vmem_limit = int(min(max(16 * 2**20, 1.5 * vmem_need + 2 * 2**20), 48 * 2**20))

    row_sem = pltpu.CORE_PARALLEL if use_core_parallel else "parallel"

    out_packed = pl.pallas_call(
        functools.partial(_mask_embed_kernel, chunk=chunk),
        out_shape=jax.ShapeDtypeStruct((rows, lanes), jnp.float32),
        grid=(num_tiles,),
        in_specs=[
            pl.BlockSpec((Kdim, t), lambda i: (0, i)),       # lane-dense x slab
            pl.BlockSpec((Kdim, lanes), lambda i: (0, 0)),   # folded weights
            pl.BlockSpec((1, lanes), lambda i: (0, 0)),      # bias row
        ],
        out_specs=pl.BlockSpec((t, lanes), lambda i: (i, 0)),
        compiler_params=pltpu.CompilerParams(
            dimension_semantics=(row_sem,),
            vmem_limit_bytes=vmem_limit),
    )(xk, w2, b_row)

    out_flat = out_packed.reshape(rows * pack, E)    # free (bitcast) reshape
    if rows * pack != N:
        out_flat = out_flat[:N]                      # only for ragged N % pack
    return out_flat.reshape(B, L, E)


if __name__ == "__main__":
    # Module defaults: rec_len=25, embed_dim=64, norm_layer=None (Identity).
    B, L, E = 2, 25, 64

    key = jax.random.PRNGKey(0)
    kx, kw, kb = jax.random.split(key, 3)
    x = jax.random.normal(kx, (B, 1, L), dtype=jnp.float32)
    # Conv1d(1, E, 1) parameters: weight (E, 1, 1) -> (E,), bias (E,).
    weight = jax.random.uniform(kw, (E,), minval=-1.0, maxval=1.0, dtype=jnp.float32)
    bias = jax.random.uniform(kb, (E,), minval=-1.0, maxval=1.0, dtype=jnp.float32)

    def ref_fn(xa):
        return xa[:, 0, :, None] * weight[None, None, :] + bias[None, None, :]

    out = jax.block_until_ready(mask_embed(x, weight, bias))
    assert out.shape == (B, L, E) and out.dtype == jnp.float32
    assert jnp.allclose(out, ref_fn(x), atol=1e-5, rtol=1e-5)

    # Multi-tile path (grid > 1) with a ragged final tile.
    B2, L2 = 4, 2500      # rows = 5000 -> 5 tiles of 1024 rows, last partial
    x2 = jax.random.normal(jax.random.PRNGKey(1), (B2, 1, L2), dtype=jnp.float32)
    out2 = jax.block_until_ready(mask_embed(x2, weight, bias, tile_rows=1024))
    assert out2.shape == (B2, L2, E)
    assert jnp.allclose(out2, ref_fn(x2), atol=1e-5, rtol=1e-5)

    # Ragged N % pack tail (odd number of positions).
    B3, L3 = 1, 33
    x3 = jax.random.normal(jax.random.PRNGKey(2), (B3, 1, L3), dtype=jnp.float32)
    out3 = jax.block_until_ready(mask_embed(x3, weight, bias))
    assert out3.shape == (B3, L3, E)
    assert jnp.allclose(out3, ref_fn(x3), atol=1e-5, rtol=1e-5)

    print("KERNEL_OK")
</pallas_src>

<mosaic_0001>
module attributes {stable_mosaic.version = 11 : i64} {
  func.func @_mask_embed_kernel(%arg0: i32, %arg1: memref<8x25xf32, #tpu.memory_space<vmem>>, %arg2: memref<8x128xf32, #tpu.memory_space<vmem>>, %arg3: memref<1x128xf32, #tpu.memory_space<vmem>>, %arg4: memref<25x128xf32, #tpu.memory_space<vmem>>) attributes {dimension_semantics = [#tpu.dimension_semantics<parallel>], iteration_bounds = array<i64: 1>, scalar_prefetch = 0 : i64, scratch_operands = 0 : i64, tpu.core_type = #tpu.core_type<tc>, window_params = [{transform_indices = @transform_0, window_bounds = array<i64: 8, 25>}, {pipeline_mode = #tpu.pipeline_mode<synchronous>, transform_indices = @transform_1, window_bounds = array<i64: 8, 128>}, {pipeline_mode = #tpu.pipeline_mode<synchronous>, transform_indices = @transform_2, window_bounds = array<i64: 1, 128>}, {transform_indices = @transform_3, window_bounds = array<i64: 25, 128>}]} {
    %c0 = arith.constant 0 : index
    %c0_0 = arith.constant 0 : index
    %0 = vector.load %arg2[%c0, %c0_0] : memref<8x128xf32, #tpu.memory_space<vmem>>, vector<8x128xf32>
    %c0_1 = arith.constant 0 : index
    %c0_2 = arith.constant 0 : index
    %1 = vector.load %arg3[%c0_1, %c0_2] : memref<1x128xf32, #tpu.memory_space<vmem>>, vector<1x128xf32>
    %c0_3 = arith.constant 0 : index
    %c0_4 = arith.constant 0 : index
    %2 = vector.load %arg1[%c0_3, %c0_4] : memref<8x25xf32, #tpu.memory_space<vmem>>, vector<8x25xf32>
    %cst = arith.constant dense<0.000000e+00> : vector<25x128xf32>
    %3 = tpu.matmul %2, %0, %cst {dimension_numbers = #tpu.dot_dimension_numbers<[0], [0], [1], [1], [0, 1, 1, 1], [], []>, precision = #tpu.contract_precision<fp32>} : vector<8x25xf32>, vector<8x128xf32>, vector<25x128xf32> -> vector<25x128xf32>
    %4 = vector.broadcast %1 : vector<1x128xf32> to vector<25x128xf32>
    %5 = arith.addf %3, %4 : vector<25x128xf32>
    %c0_5 = arith.constant 0 : index
    %c0_6 = arith.constant 0 : index
    %6 = vector.load %arg4[%c0_5, %c0_6] : memref<25x128xf32, #tpu.memory_space<vmem>>, vector<25x128xf32>
    tpu.vector_store %arg4[%c0_5, %c0_6], %5 {strides = array<i32>} : memref<25x128xf32, #tpu.memory_space<vmem>>, vector<25x128xf32>,
    return
  }
  func.func @transform_0(%arg0: i32) -> (i32, i32) {
    %c0_i32 = arith.constant 0 : i32
    %c0_i32_0 = arith.constant 0 : i32
    return %c0_i32, %arg0 : i32, i32
  }
  func.func @transform_1(%arg0: i32) -> (i32, i32) {
    %c0_i32 = arith.constant 0 : i32
    %c0_i32_0 = arith.constant 0 : i32
    %c0_i32_1 = arith.constant 0 : i32
    return %c0_i32, %c0_i32_0 : i32, i32
  }
  func.func @transform_2(%arg0: i32) -> (i32, i32) {
    %c0_i32 = arith.constant 0 : i32
    %c0_i32_0 = arith.constant 0 : i32
    %c0_i32_1 = arith.constant 0 : i32
    return %c0_i32, %c0_i32_0 : i32, i32
  }
  func.func @transform_3(%arg0: i32) -> (i32, i32) {
    %c0_i32 = arith.constant 0 : i32
    %c0_i32_0 = arith.constant 0 : i32
    return %arg0, %c0_i32 : i32, i32
  }
}

</mosaic_0001>

<llo_original>
// kernel: tpu_custom_call.1
$region0: #{tpu_custom_call.1}
  #allocation0 [shape = 'u32[]', space=smem, size = 0x4, offset = 0x4, fixed_abs, tag = 'smem constant byte address 0x4 - core index']
  #allocation1 [shape = 'u32[144,128]{1,0:T(1,128)}', space=vmem, size = 0x12000, scoped, tag = 'internal scratch']
  %s0 = inlined_call_operand.hbm [shape: f32[8,25], index: 0, kind: input, shape index: {}]
  %s1 = inlined_call_operand.hbm [shape: f32[8,128], index: 1, kind: input, shape index: {}]
  %s2 = inlined_call_operand.vmem [shape: f32[1,128], index: 2, kind: input, shape index: {}]
  %s3 = inlined_call_operand.hbm [shape: f32[25,128], index: 3, kind: output, shape index: {}]
  %s4 = sld [smem:[#allocation0]]
  $region30: #{tpu_custom_call.1} parent=0
    _
  %s6 = ssub.s32 1, %s4
  %s7 = scalar_select 0, %s6, %s4
  $region1: #{tpu_custom_call.1} parent=0
    #allocation2 [shape = 'u8[4096]{0}', space=vmem, size = 0x1000, scoped, tag = 'input window, operand 0, single buffered']
    #allocation3 [shape = 's32[1]{0}', space=sflag, size = 0x4, scoped, tag = 'scoped memory for tpu_custom_call.1']
    #allocation4 [shape = 's32[1]{0}', space=sflag, size = 0x4, scoped, tag = 'scoped memory for tpu_custom_call.1']
    #allocation5 [shape = 'u8[4096]{0}', space=vmem, size = 0x1000, scoped, tag = 'input window, operand 1, single buffered']
    #allocation6 [shape = 's32[1]{0}', space=sflag, size = 0x4, scoped, tag = 'scoped memory for tpu_custom_call.1']
    #allocation7 [shape = 'u8[16384]{0}', space=vmem, size = 0x4000, scoped, tag = 'output window, operand 0, single buffered']
    %8 = vsyncpa [#allocation3], 0
    %9 = vsyncpa [#allocation6], 0
    %10 = vsyncpa [#allocation4], 0
    // Predicated region
    $region2: #{tpu_custom_call.1} parent=1 // pred_check
      _
    $region3: #{tpu_custom_call.1} parent=1 // pred_check_branch
      %12 = sbr.rel (0) target = $region5
    $region4: #{tpu_custom_call.1} parent=1 // pred_region
      %s14 = ssub.s32 128, 128
      %15 = vsyncadd [#allocation3], %s14
      %s17 = sshll.u32 [#allocation2], 4
      %s18 = int_to_ptr.vmem [resolvable:$true] %s17
      %20 = dma.hbm_to_vmem [thread:$0]  %s0, 128, %s18, [#allocation3]
    $region5: #{tpu_custom_call.1} parent=1 // pred_fallthru
      _
    // Predicated region
    $region6: #{tpu_custom_call.1} parent=1 // pred_check
      _
    $region7: #{tpu_custom_call.1} parent=1 // pred_check_branch
      %22 = sbr.rel (0) target = $region9
    $region8: #{tpu_custom_call.1} parent=1 // pred_region
      %s24 = ssub.s32 128, 128
      %25 = vsyncadd [#allocation6], %s24
      %s27 = sshll.u32 [#allocation5], 4
      %s28 = int_to_ptr.vmem [resolvable:$true] %s27
      %30 = dma.hbm_to_vmem [thread:$0]  %s1, 128, %s28, [#allocation6]
    $region9: #{tpu_custom_call.1} parent=1 // pred_fallthru
      _
    // Predicated region
    $region10: #{tpu_custom_call.1} parent=1 // pred_check
      _
    $region11: #{tpu_custom_call.1} parent=1 // pred_check_branch
      %32 = sbr.rel (0) target = $region13
    $region12: #{tpu_custom_call.1} parent=1 // pred_region
      _
    $region13: #{tpu_custom_call.1} parent=1 // pred_fallthru
      _
    // Predicated region
    $region14: #{tpu_custom_call.1} parent=1 // pred_check
      _
    $region15: #{tpu_custom_call.1} parent=1 // pred_check_branch
      %34 = sbr.rel (0) target = $region17
    $region16: #{tpu_custom_call.1} parent=1 // pred_region
      %35 = dma.done [#allocation3], 128
    $region17: #{tpu_custom_call.1} parent=1 // pred_fallthru
      _
    // Predicated region
    $region18: #{tpu_custom_call.1} parent=1 // pred_check
      _
    $region19: #{tpu_custom_call.1} parent=1 // pred_check_branch
      %37 = sbr.rel (0) target = $region21
    $region20: #{tpu_custom_call.1} parent=1 // pred_region
      %38 = dma.done [#allocation6], 128
    $region21: #{tpu_custom_call.1} parent=1 // pred_fallthru
      _
    %v39 = vld [vmem:[#allocation5] sm:$0xff]
    %v40 = vld [vmem:[%s2] sm:$0x1]
    %v41 = vld [vmem:[#allocation2] sm:$0xff]
    %v43 = vlaneseq
    %v44 = vshrl.u32 %v43, 7
    %v45 = vsub.s32 0, %v44
    %v46 = vrot.slane %v40, %v45
    %48 = vxpose.xlu0.b32.start [1/16] %v41, 128
    %49 = vxpose.xlu0.b32.cont [2/16] 0.0, 128
    %50 = vxpose.xlu0.b32.cont [3/16] 0.0, 128
    %51 = vxpose.xlu0.b32.cont [4/16] 0.0, 128
    %52 = vxpose.xlu0.b32.cont [5/16] 0.0, 128
    %53 = vxpose.xlu0.b32.cont [6/16] 0.0, 128
    %54 = vxpose.xlu0.b32.cont [7/16] 0.0, 128
    %55 = vxpose.xlu0.b32.cont [8/16] 0.0, 128
    %56 = vxpose.xlu0.b32.cont [9/16] 0.0, 128
    %57 = vxpose.xlu0.b32.cont [10/16] 0.0, 128
    %58 = vxpose.xlu0.b32.cont [11/16] 0.0, 128
    %59 = vxpose.xlu0.b32.cont [12/16] 0.0, 128
    %60 = vxpose.xlu0.b32.cont [13/16] 0.0, 128
    %61 = vxpose.xlu0.b32.cont [14/16] 0.0, 128
    %62 = vxpose.xlu0.b32.cont [15/16] 0.0, 128
    %63 = vxpose.xlu0.b32.end [16/16] 0.0, 128
    %v64 = vpop.trf.xlu0
    %v65 = vpop.trf.xlu0
    %v66 = vpop.trf.xlu0
    %v67 = vpop.trf.xlu0
    %v68 = vpop.trf.xlu0
    %v69 = vpop.trf.xlu0
    %v70 = vpop.trf.xlu0
    %v71 = vpop.trf.xlu0
    %v72 = vpop.trf.xlu0
    %v73 = vpop.trf.xlu0
    %v74 = vpop.trf.xlu0
    %v75 = vpop.trf.xlu0
    %v76 = vpop.trf.xlu0
    %v77 = vpop.trf.xlu0
    %v78 = vpop.trf.xlu0
    %v79 = vpop.trf.xlu0
    %vm80 = vcmask 64512
    %v82 = vsel %vm80, %v64, 0
    %v85 = vsel %vm80, %v65, 0
    %v88 = vsel %vm80, %v66, 0
    %v91 = vsel %vm80, %v67, 0
    %93 = vmatprep.subr.mxu0 0.0
    %v94 = vand.u32 %v39, 4294901760
    %95 = vmatpush1.msra.mxu0 %v94
    %96 = vmatprep.subr.mxu0 0.0
    %97 = vmatpush1.msra.mxu0 0.0
    %98 = vmatprep.subr.mxu0 0.0
    %99 = vmatpush1.msra.mxu0 0.0
    %100 = vmatprep.subr.mxu0 0.0
    %101 = vmatpush1.msra.mxu0 0.0
    %102 = vmatprep.subr.mxu0 0.0
    %103 = vmatpush1.msra.mxu0 0.0
    %104 = vmatprep.subr.mxu0 0.0
    %105 = vmatpush1.msra.mxu0 0.0
    %106 = vmatprep.subr.mxu0 0.0
    %107 = vmatpush1.msra.mxu0 0.0
    %108 = vmatprep.subr.mxu0 0.0
    %109 = vmatpush1.msra.mxu0 0.0
    %110 = vmatprep.subr.mxu0 0.0
    %111 = vmatpush1.msra.mxu0 0.0
    %112 = vmatprep.subr.mxu0 0.0
    %113 = vmatpush1.msra.mxu0 0.0
    %114 = vmatprep.subr.mxu0 0.0
    %115 = vmatpush1.msra.mxu0 0.0
    %116 = vmatprep.subr.mxu0 0.0
    %117 = vmatpush1.msra.mxu0 0.0
    %118 = vmatprep.subr.mxu0 0.0
    %119 = vmatpush1.msra.mxu0 0.0
    %120 = vmatprep.subr.mxu0 0.0
    %121 = vmatpush1.msra.mxu0 0.0
    %122 = vmatprep.subr.mxu0 0.0
    %123 = vmatpush1.msra.mxu0 0.0
    %124 = vmatprep.subr.mxu0 0.0
    %125 = vmatpush1.msra.mxu0 0.0
    %126 = vmatprep.subr.mxu0 0.0
    %127 = vmatpush1.msra.mxu0 0.0
    %128 = vmatprep.subr.mxu0 0.0
    %129 = vmatpush1.msra.mxu0 0.0
    %130 = vmatprep.subr.mxu0 0.0
    %131 = vmatpush1.msra.mxu0 0.0
    %132 = vmatprep.subr.mxu0 0.0
    %133 = vmatpush1.msra.mxu0 0.0
    %134 = vmatprep.subr.mxu0 0.0
    %135 = vmatpush1.msra.mxu0 0.0
    %136 = vmatprep.subr.mxu0 0.0
    %137 = vmatpush1.msra.mxu0 0.0
    %138 = vmatprep.subr.mxu0 0.0
    %139 = vmatpush1.msra.mxu0 0.0
    %140 = vmatprep.subr.mxu0 0.0
    %141 = vmatpush1.msra.mxu0 0.0
    %142 = vmatprep.subr.mxu0 0.0
    %143 = vmatpush1.msra.mxu0 0.0
    %144 = vmatprep.subr.mxu0 0.0
    %145 = vmatpush1.msra.mxu0 0.0
    %146 = vmatprep.subr.mxu0 0.0
    %147 = vmatpush1.msra.mxu0 0.0
    %148 = vmatprep.subr.mxu0 0.0
    %149 = vmatpush1.msra.mxu0 0.0
    %150 = vmatprep.subr.mxu0 0.0
    %151 = vmatpush1.msra.mxu0 0.0
    %152 = vmatprep.subr.mxu0 0.0
    %153 = vmatpush1.msra.mxu0 0.0
    %154 = vmatprep.subr.mxu0 0.0
    %155 = vmatpush1.msra.mxu0 0.0
    %156 = vmatprep.subr.mxu0 0.0
    %157 = vmatpush1.msra.mxu0 0.0
    %158 = vmatprep.mubr.f32.mxu0 0.0
    %v159 = vand.u32 %v82, 4294901760
    %v160 = vsub.f32 %v82, %v159
    %v161 = vand.u32 %v160, 4294901760
    %v162 = vsub.f32 %v160, %v161
    %v163 = vand.u32 %v162, 4294901760
    %164 = vmatmul.mubr.f32.gmra.mrb[0].mxu0 %v163
    %v165 = vpop.f32.mrb[0].mxu0
    %v166 = vadd.f32 %v46, %v165
    %v167 = vpop.f32.mrb[0].mxu0
    %168 = vmatprep.mubr.f32.mxu0 0.0
    %v169 = vand.u32 %v85, 4294901760
    %v170 = vsub.f32 %v85, %v169
    %v171 = vand.u32 %v170, 4294901760
    %v172 = vsub.f32 %v170, %v171
    %v173 = vand.u32 %v172, 4294901760
    %174 = vmatmul.mubr.f32.gmra.mrb[0].mxu0 %v173
    %v175 = vpop.f32.mrb[0].mxu0
    %v176 = vadd.f32 %v46, %v175
    %v177 = vpop.f32.mrb[0].mxu0
    %178 = vmatprep.mubr.f32.mxu0 0.0
    %v179 = vand.u32 %v88, 4294901760
    %v180 = vsub.f32 %v88, %v179
    %v181 = vand.u32 %v180, 4294901760
    %v182 = vsub.f32 %v180, %v181
    %v183 = vand.u32 %v182, 4294901760
    %184 = vmatmul.mubr.f32.gmra.mrb[0].mxu0 %v183
    %v185 = vpop.f32.mrb[0].mxu0
    %v186 = vadd.f32 %v46, %v185
    %v187 = vpop.f32.mrb[0].mxu0
    %188 = vmatprep.mubr.f32.mxu0 0.0
    %v189 = vand.u32 %v91, 4294901760
    %v190 = vsub.f32 %v91, %v189
    %v191 = vand.u32 %v190, 4294901760
    %v192 = vsub.f32 %v190, %v191
    %v193 = vand.u32 %v192, 4294901760
    %194 = vmatmul.mubr.f32.gmra.mrb[0].mxu0 %v193
    %v195 = vpop.f32.mrb[0].mxu0
    %v196 = vadd.f32 %v46, %v195
    %v197 = vpop.f32.mrb[0].mxu0
    %198 = vdwg.mxu0
    %199 = vmatprep.subr.mxu0 0.0
    %v200 = vand.u32 %v39, 4294901760
    %v201 = vsub.f32 %v39, %v200
    %v202 = vand.u32 %v201, 4294901760
    %v203 = vsub.f32 %v201, %v202
    %v204 = vand.u32 %v203, 4294901760
    %205 = vmatpush1.msra.mxu0 %v204
    %206 = vmatprep.subr.mxu0 0.0
    %207 = vmatpush1.msra.mxu0 0.0
    %208 = vmatprep.subr.mxu0 0.0
    %209 = vmatpush1.msra.mxu0 0.0
    %210 = vmatprep.subr.mxu0 0.0
    %211 = vmatpush1.msra.mxu0 0.0
    %212 = vmatprep.subr.mxu0 0.0
    %213 = vmatpush1.msra.mxu0 0.0
    %214 = vmatprep.subr.mxu0 0.0
    %215 = vmatpush1.msra.mxu0 0.0
    %216 = vmatprep.subr.mxu0 0.0
    %217 = vmatpush1.msra.mxu0 0.0
    %218 = vmatprep.subr.mxu0 0.0
    %219 = vmatpush1.msra.mxu0 0.0
    %220 = vmatprep.subr.mxu0 0.0
    %221 = vmatpush1.msra.mxu0 0.0
    %222 = vmatprep.subr.mxu0 0.0
    %223 = vmatpush1.msra.mxu0 0.0
    %224 = vmatprep.subr.mxu0 0.0
    %225 = vmatpush1.msra.mxu0 0.0
    %226 = vmatprep.subr.mxu0 0.0
    %227 = vmatpush1.msra.mxu0 0.0
    %228 = vmatprep.subr.mxu0 0.0
    %229 = vmatpush1.msra.mxu0 0.0
    %230 = vmatprep.subr.mxu0 0.0
    %231 = vmatpush1.msra.mxu0 0.0
    %232 = vmatprep.subr.mxu0 0.0
    %233 = vmatpush1.msra.mxu0 0.0
    %234 = vmatprep.subr.mxu0 0.0
    %235 = vmatpush1.msra.mxu0 0.0
    %236 = vmatprep.subr.mxu0 0.0
    %237 = vmatpush1.msra.mxu0 0.0
    %238 = vmatprep.subr.mxu0 0.0
    %239 = vmatpush1.msra.mxu0 0.0
    %240 = vmatprep.subr.mxu0 0.0
    %241 = vmatpush1.msra.mxu0 0.0
    %242 = vmatprep.subr.mxu0 0.0
    %243 = vmatpush1.msra.mxu0 0.0
    %244 = vmatprep.subr.mxu0 0.0
    %245 = vmatpush1.msra.mxu0 0.0
    %246 = vmatprep.subr.mxu0 0.0
    %247 = vmatpush1.msra.mxu0 0.0
    %248 = vmatprep.subr.mxu0 0.0
    %249 = vmatpush1.msra.mxu0 0.0
    %250 = vmatprep.subr.mxu0 0.0
    %251 = vmatpush1.msra.mxu0 0.0
    %252 = vmatprep.subr.mxu0 0.0
    %253 = vmatpush1.msra.mxu0 0.0
    %254 = vmatprep.subr.mxu0 0.0
    %255 = vmatpush1.msra.mxu0 0.0
    %256 = vmatprep.subr.mxu0 0.0
    %257 = vmatpush1.msra.mxu0 0.0
    %258 = vmatprep.subr.mxu0 0.0
    %259 = vmatpush1.msra.mxu0 0.0
    %260 = vmatprep.subr.mxu0 0.0
    %261 = vmatpush1.msra.mxu0 0.0
    %262 = vmatprep.subr.mxu0 0.0
    %263 = vmatpush1.msra.mxu0 0.0
    %264 = vmatprep.subr.mxu0 0.0
    %265 = vmatpush1.msra.mxu0 0.0
    %266 = vmatprep.subr.mxu0 0.0
    %267 = vmatpush1.msra.mxu0 0.0
    %268 = vmatprep.mubr.f32.mxu0 0.0
    %v269 = vand.u32 %v82, 4294901760
    %270 = vmatmul.mubr.f32.gmra.mrb[0].mxu0 %v269
    %v271 = vpop.f32.mrb[0].mxu0
    %v272 = vadd.f32 %v166, %v271
    %v273 = vpop.f32.mrb[0].mxu0
    %274 = vmatprep.mubr.f32.mxu0 0.0
    %v275 = vand.u32 %v85, 4294901760
    %276 = vmatmul.mubr.f32.gmra.mrb[0].mxu0 %v275
    %v277 = vpop.f32.mrb[0].mxu0
    %v278 = vadd.f32 %v176, %v277
    %v279 = vpop.f32.mrb[0].mxu0
    %280 = vmatprep.mubr.f32.mxu0 0.0
    %v281 = vand.u32 %v88, 4294901760
    %282 = vmatmul.mubr.f32.gmra.mrb[0].mxu0 %v281
    %v283 = vpop.f32.mrb[0].mxu0
    %v284 = vadd.f32 %v186, %v283
    %v285 = vpop.f32.mrb[0].mxu0
    %286 = vmatprep.mubr.f32.mxu0 0.0
    %v287 = vand.u32 %v91, 4294901760
    %288 = vmatmul.mubr.f32.gmra.mrb[0].mxu0 %v287
    %v289 = vpop.f32.mrb[0].mxu0
    %v290 = vadd.f32 %v196, %v289
    %v291 = vpop.f32.mrb[0].mxu0
    %292 = vdwg.mxu0
    %293 = vmatprep.subr.mxu0 0.0
    %v294 = vand.u32 %v39, 4294901760
    %v295 = vsub.f32 %v39, %v294
    %296 = vmatpush1.msra.mxu0 %v295
    %297 = vmatprep.subr.mxu0 0.0
    %298 = vmatpush1.msra.mxu0 0.0
    %299 = vmatprep.subr.mxu0 0.0
    %300 = vmatpush1.msra.mxu0 0.0
    %301 = vmatprep.subr.mxu0 0.0
    %302 = vmatpush1.msra.mxu0 0.0
    %303 = vmatprep.subr.mxu0 0.0
    %304 = vmatpush1.msra.mxu0 0.0
    %305 = vmatprep.subr.mxu0 0.0
    %306 = vmatpush1.msra.mxu0 0.0
    %307 = vmatprep.subr.mxu0 0.0
    %308 = vmatpush1.msra.mxu0 0.0
    %309 = vmatprep.subr.mxu0 0.0
    %310 = vmatpush1.msra.mxu0 0.0
    %311 = vmatprep.subr.mxu0 0.0
    %312 = vmatpush1.msra.mxu0 0.0
    %313 = vmatprep.subr.mxu0 0.0
    %314 = vmatpush1.msra.mxu0 0.0
    %315 = vmatprep.subr.mxu0 0.0
    %316 = vmatpush1.msra.mxu0 0.0
    %317 = vmatprep.subr.mxu0 0.0
    %318 = vmatpush1.msra.mxu0 0.0
    %319 = vmatprep.subr.mxu0 0.0
    %320 = vmatpush1.msra.mxu0 0.0
    %321 = vmatprep.subr.mxu0 0.0
    %322 = vmatpush1.msra.mxu0 0.0
    %323 = vmatprep.subr.mxu0 0.0
    %324 = vmatpush1.msra.mxu0 0.0
    %325 = vmatprep.subr.mxu0 0.0
    %326 = vmatpush1.msra.mxu0 0.0
    %327 = vmatprep.subr.mxu0 0.0
    %328 = vmatpush1.msra.mxu0 0.0
    %329 = vmatprep.subr.mxu0 0.0
    %330 = vmatpush1.msra.mxu0 0.0
    %331 = vmatprep.subr.mxu0 0.0
    %332 = vmatpush1.msra.mxu0 0.0
    %333 = vmatprep.subr.mxu0 0.0
    %334 = vmatpush1.msra.mxu0 0.0
    %335 = vmatprep.subr.mxu0 0.0
    %336 = vmatpush1.msra.mxu0 0.0
    %337 = vmatprep.subr.mxu0 0.0
    %338 = vmatpush1.msra.mxu0 0.0
    %339 = vmatprep.subr.mxu0 0.0
    %340 = vmatpush1.msra.mxu0 0.0
    %341 = vmatprep.subr.mxu0 0.0
    %342 = vmatpush1.msra.mxu0 0.0
    %343 = vmatprep.subr.mxu0 0.0
    %344 = vmatpush1.msra.mxu0 0.0
    %345 = vmatprep.subr.mxu0 0.0
    %346 = vmatpush1.msra.mxu0 0.0
    %347 = vmatprep.subr.mxu0 0.0
    %348 = vmatpush1.msra.mxu0 0.0
    %349 = vmatprep.subr.mxu0 0.0
    %350 = vmatpush1.msra.mxu0 0.0
    %351 = vmatprep.subr.mxu0 0.0
    %352 = vmatpush1.msra.mxu0 0.0
    %353 = vmatprep.subr.mxu0 0.0
    %354 = vmatpush1.msra.mxu0 0.0
    %355 = vmatprep.subr.mxu0 0.0
    %356 = vmatpush1.msra.mxu0 0.0
    %357 = vmatprep.subr.mxu0 0.0
    %358 = vmatpush1.msra.mxu0 0.0
    %359 = vmatprep.mubr.f32.mxu0 0.0
    %v360 = vand.u32 %v82, 4294901760
    %v361 = vsub.f32 %v82, %v360
    %362 = vmatmul.mubr.f32.gmra.mrb[0].mxu0 %v361
    %v363 = vpop.f32.mrb[0].mxu0
    %v364 = vadd.f32 %v272, %v363
    %v365 = vpop.f32.mrb[0].mxu0
    %366 = vmatprep.mubr.f32.mxu0 0.0
    %v367 = vand.u32 %v85, 4294901760
    %v368 = vsub.f32 %v85, %v367
    %369 = vmatmul.mubr.f32.gmra.mrb[0].mxu0 %v368
    %v370 = vpop.f32.mrb[0].mxu0
    %v371 = vadd.f32 %v278, %v370
    %v372 = vpop.f32.mrb[0].mxu0
    %373 = vmatprep.mubr.f32.mxu0 0.0
    %v374 = vand.u32 %v88, 4294901760
    %v375 = vsub.f32 %v88, %v374
    %376 = vmatmul.mubr.f32.gmra.mrb[0].mxu0 %v375
    %v377 = vpop.f32.mrb[0].mxu0
    %v378 = vadd.f32 %v284, %v377
    %v379 = vpop.f32.mrb[0].mxu0
    %380 = vmatprep.mubr.f32.mxu0 0.0
    %v381 = vand.u32 %v91, 4294901760
    %v382 = vsub.f32 %v91, %v381
    %383 = vmatmul.mubr.f32.gmra.mrb[0].mxu0 %v382
    %v384 = vpop.f32.mrb[0].mxu0
    %v385 = vadd.f32 %v290, %v384
    %v386 = vpop.f32.mrb[0].mxu0
    %387 = vdwg.mxu0
    %388 = vmatprep.subr.mxu0 0.0
    %v389 = vand.u32 %v39, 4294901760
    %390 = vmatpush1.msra.mxu0 %v389
    %391 = vmatprep.subr.mxu0 0.0
    %392 = vmatpush1.msra.mxu0 0.0
    %393 = vmatprep.subr.mxu0 0.0
    %394 = vmatpush1.msra.mxu0 0.0
    %395 = vmatprep.subr.mxu0 0.0
    %396 = vmatpush1.msra.mxu0 0.0
    %397 = vmatprep.subr.mxu0 0.0
    %398 = vmatpush1.msra.mxu0 0.0
    %399 = vmatprep.subr.mxu0 0.0
    %400 = vmatpush1.msra.mxu0 0.0
    %401 = vmatprep.subr.mxu0 0.0
    %402 = vmatpush1.msra.mxu0 0.0
    %403 = vmatprep.subr.mxu0 0.0
    %404 = vmatpush1.msra.mxu0 0.0
    %405 = vmatprep.subr.mxu0 0.0
    %406 = vmatpush1.msra.mxu0 0.0
    %407 = vmatprep.subr.mxu0 0.0
    %408 = vmatpush1.msra.mxu0 0.0
    %409 = vmatprep.subr.mxu0 0.0
    %410 = vmatpush1.msra.mxu0 0.0
    %411 = vmatprep.subr.mxu0 0.0
    %412 = vmatpush1.msra.mxu0 0.0
    %413 = vmatprep.subr.mxu0 0.0
    %414 = vmatpush1.msra.mxu0 0.0
    %415 = vmatprep.subr.mxu0 0.0
    %416 = vmatpush1.msra.mxu0 0.0
    %417 = vmatprep.subr.mxu0 0.0
    %418 = vmatpush1.msra.mxu0 0.0
    %419 = vmatprep.subr.mxu0 0.0
    %420 = vmatpush1.msra.mxu0 0.0
    %421 = vmatprep.subr.mxu0 0.0
    %422 = vmatpush1.msra.mxu0 0.0
    %423 = vmatprep.subr.mxu0 0.0
    %424 = vmatpush1.msra.mxu0 0.0
    %425 = vmatprep.subr.mxu0 0.0
    %426 = vmatpush1.msra.mxu0 0.0
    %427 = vmatprep.subr.mxu0 0.0
    %428 = vmatpush1.msra.mxu0 0.0
    %429 = vmatprep.subr.mxu0 0.0
    %430 = vmatpush1.msra.mxu0 0.0
    %431 = vmatprep.subr.mxu0 0.0
    %432 = vmatpush1.msra.mxu0 0.0
    %433 = vmatprep.subr.mxu0 0.0
    %434 = vmatpush1.msra.mxu0 0.0
    %435 = vmatprep.subr.mxu0 0.0
    %436 = vmatpush1.msra.mxu0 0.0
    %437 = vmatprep.subr.mxu0 0.0
    %438 = vmatpush1.msra.mxu0 0.0
    %439 = vmatprep.subr.mxu0 0.0
    %440 = vmatpush1.msra.mxu0 0.0
    %441 = vmatprep.subr.mxu0 0.0
    %442 = vmatpush1.msra.mxu0 0.0
    %443 = vmatprep.subr.mxu0 0.0
    %444 = vmatpush1.msra.mxu0 0.0
    %445 = vmatprep.subr.mxu0 0.0
    %446 = vmatpush1.msra.mxu0 0.0
    %447 = vmatprep.subr.mxu0 0.0
    %448 = vmatpush1.msra.mxu0 0.0
    %449 = vmatprep.subr.mxu0 0.0
    %450 = vmatpush1.msra.mxu0 0.0
    %451 = vmatprep.subr.mxu0 0.0
    %452 = vmatpush1.msra.mxu0 0.0
    %453 = vmatprep.mubr.f32.mxu0 0.0
    %v454 = vand.u32 %v82, 4294901760
    %v455 = vsub.f32 %v82, %v454
    %v456 = vand.u32 %v455, 4294901760
    %457 = vmatmul.mubr.f32.gmra.mrb[0].mxu0 %v456
    %v458 = vpop.f32.mrb[0].mxu0
    %v459 = vadd.f32 %v364, %v458
    %v460 = vpop.f32.mrb[0].mxu0
    %461 = vmatprep.mubr.f32.mxu0 0.0
    %v462 = vand.u32 %v85, 4294901760
    %v463 = vsub.f32 %v85, %v462
    %v464 = vand.u32 %v463, 4294901760
    %465 = vmatmul.mubr.f32.gmra.mrb[0].mxu0 %v464
    %v466 = vpop.f32.mrb[0].mxu0
    %v467 = vadd.f32 %v371, %v466
    %v468 = vpop.f32.mrb[0].mxu0
    %469 = vmatprep.mubr.f32.mxu0 0.0
    %v470 = vand.u32 %v88, 4294901760
    %v471 = vsub.f32 %v88, %v470
    %v472 = vand.u32 %v471, 4294901760
    %473 = vmatmul.mubr.f32.gmra.mrb[0].mxu0 %v472
    %v474 = vpop.f32.mrb[0].mxu0
    %v475 = vadd.f32 %v378, %v474
    %v476 = vpop.f32.mrb[0].mxu0
    %477 = vmatprep.mubr.f32.mxu0 0.0
    %v478 = vand.u32 %v91, 4294901760
    %v479 = vsub.f32 %v91, %v478
    %v480 = vand.u32 %v479, 4294901760
    %481 = vmatmul.mubr.f32.gmra.mrb[0].mxu0 %v480
    %v482 = vpop.f32.mrb[0].mxu0
    %v483 = vadd.f32 %v385, %v482
    %v484 = vpop.f32.mrb[0].mxu0
    %485 = vdwg.mxu0
    %486 = vmatprep.subr.mxu0 0.0
    %v487 = vand.u32 %v39, 4294901760
    %v488 = vsub.f32 %v39, %v487
    %v489 = vand.u32 %v488, 4294901760
    %490 = vmatpush1.msra.mxu0 %v489
    %491 = vmatprep.subr.mxu0 0.0
    %492 = vmatpush1.msra.mxu0 0.0
    %493 = vmatprep.subr.mxu0 0.0
    %494 = vmatpush1.msra.mxu0 0.0
    %495 = vmatprep.subr.mxu0 0.0
    %496 = vmatpush1.msra.mxu0 0.0
    %497 = vmatprep.subr.mxu0 0.0
    %498 = vmatpush1.msra.mxu0 0.0
    %499 = vmatprep.subr.mxu0 0.0
    %500 = vmatpush1.msra.mxu0 0.0
    %501 = vmatprep.subr.mxu0 0.0
    %502 = vmatpush1.msra.mxu0 0.0
    %503 = vmatprep.subr.mxu0 0.0
    %504 = vmatpush1.msra.mxu0 0.0
    %505 = vmatprep.subr.mxu0 0.0
    %506 = vmatpush1.msra.mxu0 0.0
    %507 = vmatprep.subr.mxu0 0.0
    %508 = vmatpush1.msra.mxu0 0.0
    %509 = vmatprep.subr.mxu0 0.0
    %510 = vmatpush1.msra.mxu0 0.0
    %511 = vmatprep.subr.mxu0 0.0
    %512 = vmatpush1.msra.mxu0 0.0
    %513 = vmatprep.subr.mxu0 0.0
    %514 = vmatpush1.msra.mxu0 0.0
    %515 = vmatprep.subr.mxu0 0.0
    %516 = vmatpush1.msra.mxu0 0.0
    %517 = vmatprep.subr.mxu0 0.0
    %518 = vmatpush1.msra.mxu0 0.0
    %519 = vmatprep.subr.mxu0 0.0
    %520 = vmatpush1.msra.mxu0 0.0
    %521 = vmatprep.subr.mxu0 0.0
    %522 = vmatpush1.msra.mxu0 0.0
    %523 = vmatprep.subr.mxu0 0.0
    %524 = vmatpush1.msra.mxu0 0.0
    %525 = vmatprep.subr.mxu0 0.0
    %526 = vmatpush1.msra.mxu0 0.0
    %527 = vmatprep.subr.mxu0 0.0
    %528 = vmatpush1.msra.mxu0 0.0
    %529 = vmatprep.subr.mxu0 0.0
    %530 = vmatpush1.msra.mxu0 0.0
    %531 = vmatprep.subr.mxu0 0.0
    %532 = vmatpush1.msra.mxu0 0.0
    %533 = vmatprep.subr.mxu0 0.0
    %534 = vmatpush1.msra.mxu0 0.0
    %535 = vmatprep.subr.mxu0 0.0
    %536 = vmatpush1.msra.mxu0 0.0
    %537 = vmatprep.subr.mxu0 0.0
    %538 = vmatpush1.msra.mxu0 0.0
    %539 = vmatprep.subr.mxu0 0.0
    %540 = vmatpush1.msra.mxu0 0.0
    %541 = vmatprep.subr.mxu0 0.0
    %542 = vmatpush1.msra.mxu0 0.0
    %543 = vmatprep.subr.mxu0 0.0
    %544 = vmatpush1.msra.mxu0 0.0
    %545 = vmatprep.subr.mxu0 0.0
    %546 = vmatpush1.msra.mxu0 0.0
    %547 = vmatprep.subr.mxu0 0.0
    %548 = vmatpush1.msra.mxu0 0.0
    %549 = vmatprep.subr.mxu0 0.0
    %550 = vmatpush1.msra.mxu0 0.0
    %551 = vmatprep.subr.mxu0 0.0
    %552 = vmatpush1.msra.mxu0 0.0
    %553 = vmatprep.mubr.f32.mxu0 0.0
    %v554 = vand.u32 %v82, 4294901760
    %555 = vmatmul.mubr.f32.gmra.mrb[0].mxu0 %v554
    %v556 = vpop.f32.mrb[0].mxu0
    %v557 = vadd.f32 %v459, %v556
    %v558 = vpop.f32.mrb[0].mxu0
    %559 = vmatprep.mubr.f32.mxu0 0.0
    %v560 = vand.u32 %v85, 4294901760
    %561 = vmatmul.mubr.f32.gmra.mrb[0].mxu0 %v560
    %v562 = vpop.f32.mrb[0].mxu0
    %v563 = vadd.f32 %v467, %v562
    %v564 = vpop.f32.mrb[0].mxu0
    %565 = vmatprep.mubr.f32.mxu0 0.0
    %v566 = vand.u32 %v88, 4294901760
    %567 = vmatmul.mubr.f32.gmra.mrb[0].mxu0 %v566
    %v568 = vpop.f32.mrb[0].mxu0
    %v569 = vadd.f32 %v475, %v568
    %v570 = vpop.f32.mrb[0].mxu0
    %571 = vmatprep.mubr.f32.mxu0 0.0
    %v572 = vand.u32 %v91, 4294901760
    %573 = vmatmul.mubr.f32.gmra.mrb[0].mxu0 %v572
    %v574 = vpop.f32.mrb[0].mxu0
    %v575 = vadd.f32 %v483, %v574
    %v576 = vpop.f32.mrb[0].mxu0
    %577 = vdwg.mxu0
    %578 = vmatprep.subr.mxu0 0.0
    %v579 = vand.u32 %v39, 4294901760
    %580 = vmatpush1.msra.mxu0 %v579
    %581 = vmatprep.subr.mxu0 0.0
    %582 = vmatpush1.msra.mxu0 0.0
    %583 = vmatprep.subr.mxu0 0.0
    %584 = vmatpush1.msra.mxu0 0.0
    %585 = vmatprep.subr.mxu0 0.0
    %586 = vmatpush1.msra.mxu0 0.0
    %587 = vmatprep.subr.mxu0 0.0
    %588 = vmatpush1.msra.mxu0 0.0
    %589 = vmatprep.subr.mxu0 0.0
    %590 = vmatpush1.msra.mxu0 0.0
    %591 = vmatprep.subr.mxu0 0.0
    %592 = vmatpush1.msra.mxu0 0.0
    %593 = vmatprep.subr.mxu0 0.0
    %594 = vmatpush1.msra.mxu0 0.0
    %595 = vmatprep.subr.mxu0 0.0
    %596 = vmatpush1.msra.mxu0 0.0
    %597 = vmatprep.subr.mxu0 0.0
    %598 = vmatpush1.msra.mxu0 0.0
    %599 = vmatprep.subr.mxu0 0.0
    %600 = vmatpush1.msra.mxu0 0.0
    %601 = vmatprep.subr.mxu0 0.0
    %602 = vmatpush1.msra.mxu0 0.0
    %603 = vmatprep.subr.mxu0 0.0
    %604 = vmatpush1.msra.mxu0 0.0
    %605 = vmatprep.subr.mxu0 0.0
    %606 = vmatpush1.msra.mxu0 0.0
    %607 = vmatprep.subr.mxu0 0.0
    %608 = vmatpush1.msra.mxu0 0.0
    %609 = vmatprep.subr.mxu0 0.0
    %610 = vmatpush1.msra.mxu0 0.0
    %611 = vmatprep.subr.mxu0 0.0
    %612 = vmatpush1.msra.mxu0 0.0
    %613 = vmatprep.subr.mxu0 0.0
    %614 = vmatpush1.msra.mxu0 0.0
    %615 = vmatprep.subr.mxu0 0.0
    %616 = vmatpush1.msra.mxu0 0.0
    %617 = vmatprep.subr.mxu0 0.0
    %618 = vmatpush1.msra.mxu0 0.0
    %619 = vmatprep.subr.mxu0 0.0
    %620 = vmatpush1.msra.mxu0 0.0
    %621 = vmatprep.subr.mxu0 0.0
    %622 = vmatpush1.msra.mxu0 0.0
    %623 = vmatprep.subr.mxu0 0.0
    %624 = vmatpush1.msra.mxu0 0.0
    %625 = vmatprep.subr.mxu0 0.0
    %626 = vmatpush1.msra.mxu0 0.0
    %627 = vmatprep.subr.mxu0 0.0
    %628 = vmatpush1.msra.mxu0 0.0
    %629 = vmatprep.subr.mxu0 0.0
    %630 = vmatpush1.msra.mxu0 0.0
    %631 = vmatprep.subr.mxu0 0.0
    %632 = vmatpush1.msra.mxu0 0.0
    %633 = vmatprep.subr.mxu0 0.0
    %634 = vmatpush1.msra.mxu0 0.0
    %635 = vmatprep.subr.mxu0 0.0
    %636 = vmatpush1.msra.mxu0 0.0
    %637 = vmatprep.subr.mxu0 0.0
    %638 = vmatpush1.msra.mxu0 0.0
    %639 = vmatprep.subr.mxu0 0.0
    %640 = vmatpush1.msra.mxu0 0.0
    %641 = vmatprep.subr.mxu0 0.0
    %642 = vmatpush1.msra.mxu0 0.0
    %643 = vmatprep.mubr.f32.mxu0 0.0
    %v644 = vand.u32 %v82, 4294901760
    %645 = vmatmul.mubr.f32.gmra.mrb[0].mxu0 %v644
    %v646 = vpop.f32.mrb[0].mxu0
    %v647 = vadd.f32 %v557, %v646
    %v648 = vpop.f32.mrb[0].mxu0
    %649 = vmatprep.mubr.f32.mxu0 0.0
    %v650 = vand.u32 %v85, 4294901760
    %651 = vmatmul.mubr.f32.gmra.mrb[0].mxu0 %v650
    %v652 = vpop.f32.mrb[0].mxu0
    %v653 = vadd.f32 %v563, %v652
    %v654 = vpop.f32.mrb[0].mxu0
    %655 = vmatprep.mubr.f32.mxu0 0.0
    %v656 = vand.u32 %v88, 4294901760
    %657 = vmatmul.mubr.f32.gmra.mrb[0].mxu0 %v656
    %v658 = vpop.f32.mrb[0].mxu0
    %v659 = vadd.f32 %v569, %v658
    %v660 = vpop.f32.mrb[0].mxu0
    %661 = vmatprep.mubr.f32.mxu0 0.0
    %v662 = vand.u32 %v91, 4294901760
    %663 = vmatmul.mubr.f32.gmra.mrb[0].mxu0 %v662
    %v664 = vpop.f32.mrb[0].mxu0
    %v665 = vadd.f32 %v575, %v664
    %v666 = vpop.f32.mrb[0].mxu0
    %667 = vdwg.mxu0
    %668 = vst [vmem:[#allocation7] sm:$0xff] %v647
    %669 = vst [vmem:[#allocation7 + $0x8] sm:$0xff] %v653
    %670 = vst [vmem:[#allocation7 + $0x10] sm:$0xff] %v659
    %671 = vst [vmem:[#allocation7 + $0x18] sm:$0x1] %v665
    // Predicated region
    $region22: #{tpu_custom_call.1} parent=1 // pred_check
      _
    $region23: #{tpu_custom_call.1} parent=1 // pred_check_branch
      %673 = sbr.rel (0) target = $region25
    $region24: #{tpu_custom_call.1} parent=1 // pred_region
      %s675 = ssub.s32 512, 512
      %676 = vsyncadd [#allocation4], %s675
      %s677 = sshll.u32 [#allocation7], 4
      %s678 = int_to_ptr.vmem [resolvable:$true] %s677
      %683 = dma.vmem_to_hbm [thread:$0]  %s678, 512, %s3, [#allocation4], 128, 128, 8
    $region25: #{tpu_custom_call.1} parent=1 // pred_fallthru
      _
    // Predicated region
    $region26: #{tpu_custom_call.1} parent=1 // pred_check
      _
    $region27: #{tpu_custom_call.1} parent=1 // pred_check_branch
      %685 = sbr.rel (0) target = $region29
    $region28: #{tpu_custom_call.1} parent=1 // pred_region
      %686 = dma.done [#allocation4], 512
    $region29: #{tpu_custom_call.1} parent=1 // pred_fallthru
      _
    %687 = vsyncpa [#allocation3], 1
    %688 = vsyncpa [#allocation6], 1
    %689 = vsyncpa [#allocation4], 1

</llo_original>
